<compile_context>
chip_gen: v5e
topology: v5e:2x2
jax: 0.10.0
libtpu: 0.0.40
codegen_flags: <defaults>
</compile_context>

<pallas_src>
import jax
import jax.numpy as jnp
from jax.experimental import pallas as pl
from jax.experimental.pallas import tpu as pltpu


def _exp_score_kernel(delta_ref, pad_ref, seq_ref, user_ref, pool_ref, score_ref):
    # delta_ref : [1, L]   learnable per-position weights (row vector)
    # pad_ref   : [1, L]   1.0 where the position is padding, else 0.0
    # seq_ref   : [L, D]   sequence item embeddings (grid-resident)
    # user_ref  : [1, D]   user embedding (grid-resident)
    # pool_ref  : [D, TP]  candidate-pool slab, pre-transposed so P is lane-dense
    # score_ref : [1, TP]  output scores (lane-dense)
    cd = jnp.clip(delta_ref[...].astype(jnp.float32), 0.0, 1.0)   # clamp(delta, 0, 1)
    cd = jnp.where(pad_ref[...] > 0.5, 1.0, cd)                   # clamped_delta[padding_ids] = 1

    # weighted pooling on the MXU: [1,L] @ [L,D] -> [1,D]
    # (recomputed per pool tile; only ~2*L*D flops, keeps the grid order-free)
    h = jnp.dot(cd.astype(seq_ref.dtype), seq_ref[...],
                preferred_element_type=jnp.float32,
                precision=jax.lax.Precision.HIGHEST)
    h = h + user_ref[...].astype(jnp.float32)                     # [1, D]

    # scoring matvec on the MXU: [1,D] @ [D,TP] -> [1,TP] (unmasked lane-dense store)
    score_ref[...] = jnp.dot(h.astype(pool_ref.dtype), pool_ref[...],
                             preferred_element_type=jnp.float32,
                             precision=jax.lax.Precision.HIGHEST)


def exp_generator_forward(delta, padding_ids, seq_emb, user_emb, pool_emb, *, tp=512):
    """Scores = predict_counter(user, seq, pool, clamp_delta(delta))."""
    L, D = seq_emb.shape
    P = pool_emb.shape[0]

    # Dense padding mask from padding_ids (wrapper side, outside the hot path).
    pad_mask = jnp.zeros((L,), jnp.float32).at[padding_ids].set(1.0)
    delta_row = delta.reshape(1, L).astype(jnp.float32)
    pad_row = pad_mask.reshape(1, L)

    # Lane-dense scoring layout: pool pre-transposed to [D, P_pad]; P padded to a
    # multiple of the (128-aligned) pool tile so every output store is unmasked.
    p_pad128 = pl.cdiv(P, 128) * 128
    tp = min(tp, p_pad128)
    p_pad = pl.cdiv(P, tp) * tp
    pool_dp = jnp.zeros((D, p_pad), pool_emb.dtype).at[:, :P].set(pool_emb.T)

    grid = (p_pad // tp,)
    itemsize = jnp.dtype(pool_emb.dtype).itemsize
    cost = pl.CostEstimate(
        flops=int(2 * p_pad * D + 2 * L * D * grid[0]),
        transcendentals=0,
        bytes_accessed=int((D * p_pad + L * D + D) * itemsize + 2 * L * 4 + p_pad * 4),
    )

    score_padded = pl.pallas_call(
        _exp_score_kernel,
        out_shape=jax.ShapeDtypeStruct((1, p_pad), jnp.float32),
        grid_spec=pltpu.PrefetchScalarGridSpec(
            num_scalar_prefetch=0,
            grid=grid,
            in_specs=[
                pl.BlockSpec((1, L), lambda i: (0, 0)),   # delta (resident)
                pl.BlockSpec((1, L), lambda i: (0, 0)),   # pad mask (resident)
                pl.BlockSpec((L, D), lambda i: (0, 0)),   # seq embeddings (resident)
                pl.BlockSpec((1, D), lambda i: (0, 0)),   # user embedding (resident)
                pl.BlockSpec((D, tp), lambda i: (0, i)),  # pool slab (streamed)
            ],
            out_specs=pl.BlockSpec((1, tp), lambda i: (0, i)),
        ),
        compiler_params=pltpu.CompilerParams(
            dimension_semantics=("parallel",),
        ),
        cost_estimate=cost,
    )(delta_row, pad_row, seq_emb, user_emb, pool_dp)

    return score_padded[0, :P]


def reference_forward(delta, padding_ids, seq_emb, user_emb, pool_emb):
    cd = jnp.clip(delta, 0.0, 1.0)
    cd = cd.at[padding_ids].set(1.0)
    h = jnp.sum(seq_emb * cd[:, None], axis=0, keepdims=True) + user_emb
    return (pool_emb @ h[0]).reshape(-1)


if __name__ == "__main__":
    L, D, P = 8, 32, 16          # seq length, hidden dim, candidate-pool size

    key = jax.random.PRNGKey(0)
    k_delta, k_seq, k_user, k_pool = jax.random.split(key, 4)

    # torch.FloatTensor(seq.shape[-1]).uniform_(0, 1)
    delta = jax.random.uniform(k_delta, (L,), jnp.float32, 0.0, 1.0)
    # first two sequence slots are padding
    padding_ids = jnp.array([0, 1], dtype=jnp.int32)

    seq_emb = jax.random.normal(k_seq, (L, D), jnp.float32) * 0.1
    user_emb = jax.random.normal(k_user, (1, D), jnp.float32) * 0.1
    pool_emb = jax.random.normal(k_pool, (P, D), jnp.float32) * 0.1

    score = exp_generator_forward(delta, padding_ids, seq_emb, user_emb, pool_emb)
    jax.block_until_ready(score)

    ref = reference_forward(delta, padding_ids, seq_emb, user_emb, pool_emb)
    assert score.shape == (P,)
    assert jnp.allclose(score, ref, atol=1e-4, rtol=1e-4), (score, ref)

    print("KERNEL_OK")
</pallas_src>

<mosaic_0001>
module attributes {stable_mosaic.version = 11 : i64} {
  func.func @_exp_score_kernel(%arg0: i32, %arg1: memref<1x8xf32, #tpu.memory_space<vmem>>, %arg2: memref<1x8xf32, #tpu.memory_space<vmem>>, %arg3: memref<8x32xf32, #tpu.memory_space<vmem>>, %arg4: memref<1x32xf32, #tpu.memory_space<vmem>>, %arg5: memref<32x128xf32, #tpu.memory_space<vmem>>, %arg6: memref<1x128xf32, #tpu.memory_space<vmem>>) attributes {dimension_semantics = [#tpu.dimension_semantics<parallel>], iteration_bounds = array<i64: 1>, scalar_prefetch = 0 : i64, scratch_operands = 0 : i64, tpu.core_type = #tpu.core_type<tc>, window_params = [{pipeline_mode = #tpu.pipeline_mode<synchronous>, transform_indices = @transform_0, window_bounds = array<i64: 1, 8>}, {pipeline_mode = #tpu.pipeline_mode<synchronous>, transform_indices = @transform_1, window_bounds = array<i64: 1, 8>}, {pipeline_mode = #tpu.pipeline_mode<synchronous>, transform_indices = @transform_2, window_bounds = array<i64: 8, 32>}, {pipeline_mode = #tpu.pipeline_mode<synchronous>, transform_indices = @transform_3, window_bounds = array<i64: 1, 32>}, {transform_indices = @transform_4, window_bounds = array<i64: 32, 128>}, {transform_indices = @transform_5, window_bounds = array<i64: 1, 128>}]} {
    %c0 = arith.constant 0 : index
    %c0_0 = arith.constant 0 : index
    %0 = vector.load %arg1[%c0, %c0_0] : memref<1x8xf32, #tpu.memory_space<vmem>>, vector<1x8xf32>
    %cst = arith.constant 0.000000e+00 : f32
    %cst_1 = arith.constant 1.000000e+00 : f32
    %1 = vector.broadcast %cst : f32 to vector<1x8xf32>
    %2 = arith.maximumf %1, %0 : vector<1x8xf32>
    %3 = vector.broadcast %cst_1 : f32 to vector<1x8xf32>
    %4 = arith.minimumf %3, %2 : vector<1x8xf32>
    %c0_2 = arith.constant 0 : index
    %c0_3 = arith.constant 0 : index
    %5 = vector.load %arg2[%c0_2, %c0_3] : memref<1x8xf32, #tpu.memory_space<vmem>>, vector<1x8xf32>
    %cst_4 = arith.constant 5.000000e-01 : f32
    %6 = vector.broadcast %cst_4 : f32 to vector<1x8xf32>
    %7 = arith.cmpf ogt, %5, %6 : vector<1x8xf32>
    %cst_5 = arith.constant 1.000000e+00 : f32
    %8 = vector.broadcast %cst_5 : f32 to vector<1x8xf32>
    %9 = arith.select %7, %8, %4 : vector<1x8xi1>, vector<1x8xf32>
    %c0_6 = arith.constant 0 : index
    %c0_7 = arith.constant 0 : index
    %10 = vector.load %arg3[%c0_6, %c0_7] : memref<8x32xf32, #tpu.memory_space<vmem>>, vector<8x32xf32>
    %cst_8 = arith.constant dense<0.000000e+00> : vector<1x32xf32>
    %11 = tpu.matmul %9, %10, %cst_8 {dimension_numbers = #tpu.dot_dimension_numbers<[1], [0], [0], [1], [0, 0, 1, 1], [], []>, precision = #tpu.contract_precision<fp32>} : vector<1x8xf32>, vector<8x32xf32>, vector<1x32xf32> -> vector<1x32xf32>
    %c0_9 = arith.constant 0 : index
    %c0_10 = arith.constant 0 : index
    %12 = vector.load %arg4[%c0_9, %c0_10] : memref<1x32xf32, #tpu.memory_space<vmem>>, vector<1x32xf32>
    %13 = arith.addf %11, %12 : vector<1x32xf32>
    %c0_11 = arith.constant 0 : index
    %c0_12 = arith.constant 0 : index
    %14 = vector.load %arg5[%c0_11, %c0_12] : memref<32x128xf32, #tpu.memory_space<vmem>>, vector<32x128xf32>
    %cst_13 = arith.constant dense<0.000000e+00> : vector<1x128xf32>
    %15 = tpu.matmul %13, %14, %cst_13 {dimension_numbers = #tpu.dot_dimension_numbers<[1], [0], [0], [1], [0, 0, 1, 1], [], []>, precision = #tpu.contract_precision<fp32>} : vector<1x32xf32>, vector<32x128xf32>, vector<1x128xf32> -> vector<1x128xf32>
    %c0_14 = arith.constant 0 : index
    %c0_15 = arith.constant 0 : index
    %16 = vector.load %arg6[%c0_14, %c0_15] : memref<1x128xf32, #tpu.memory_space<vmem>>, vector<1x128xf32>
    tpu.vector_store %arg6[%c0_14, %c0_15], %15 {strides = array<i32>} : memref<1x128xf32, #tpu.memory_space<vmem>>, vector<1x128xf32>,
    return
  }
  func.func @transform_0(%arg0: i32) -> (i32, i32) {
    %c0_i32 = arith.constant 0 : i32
    %c0_i32_0 = arith.constant 0 : i32
    %c0_i32_1 = arith.constant 0 : i32
    return %c0_i32, %c0_i32_0 : i32, i32
  }
  func.func @transform_1(%arg0: i32) -> (i32, i32) {
    %c0_i32 = arith.constant 0 : i32
    %c0_i32_0 = arith.constant 0 : i32
    %c0_i32_1 = arith.constant 0 : i32
    return %c0_i32, %c0_i32_0 : i32, i32
  }
  func.func @transform_2(%arg0: i32) -> (i32, i32) {
    %c0_i32 = arith.constant 0 : i32
    %c0_i32_0 = arith.constant 0 : i32
    %c0_i32_1 = arith.constant 0 : i32
    return %c0_i32, %c0_i32_0 : i32, i32
  }
  func.func @transform_3(%arg0: i32) -> (i32, i32) {
    %c0_i32 = arith.constant 0 : i32
    %c0_i32_0 = arith.constant 0 : i32
    %c0_i32_1 = arith.constant 0 : i32
    return %c0_i32, %c0_i32_0 : i32, i32
  }
  func.func @transform_4(%arg0: i32) -> (i32, i32) {
    %c0_i32 = arith.constant 0 : i32
    %c0_i32_0 = arith.constant 0 : i32
    return %c0_i32, %arg0 : i32, i32
  }
  func.func @transform_5(%arg0: i32) -> (i32, i32) {
    %c0_i32 = arith.constant 0 : i32
    %c0_i32_0 = arith.constant 0 : i32
    return %c0_i32, %arg0 : i32, i32
  }
}

</mosaic_0001>

<llo_original>
// kernel: tpu_custom_call.1
$region0: #{tpu_custom_call.1}
  #allocation0 [shape = 'u32[]', space=smem, size = 0x4, offset = 0x4, fixed_abs, tag = 'smem constant byte address 0x4 - core index']
  #allocation1 [shape = 'u32[72,128]{1,0:T(1,128)}', space=vmem, size = 0x9000, scoped, tag = 'internal scratch']
  %s0 = inlined_call_operand.hbm [shape: f32[1,8], index: 0, kind: input, shape index: {}]
  %s1 = inlined_call_operand.hbm [shape: f32[1,8], index: 1, kind: input, shape index: {}]
  %s2 = inlined_call_operand.hbm [shape: f32[8,32], index: 2, kind: input, shape index: {}]
  %s3 = inlined_call_operand.vmem [shape: f32[1,32], index: 3, kind: input, shape index: {}]
  %s4 = inlined_call_operand.hbm [shape: f32[32,128], index: 4, kind: input, shape index: {}]
  %s5 = inlined_call_operand.hbm [shape: f32[1,128], index: 5, kind: output, shape index: {}]
  %s6 = sld [smem:[#allocation0]]
  $region46: #{tpu_custom_call.1} parent=0
    _
  %s8 = ssub.s32 1, %s6
  %s9 = scalar_select 0, %s8, %s6
  $region1: #{tpu_custom_call.1} parent=0
    #allocation2 [shape = 'u8[512]{0}', space=vmem, size = 0x400, scoped, tag = 'input window, operand 0, single buffered']
    #allocation3 [shape = 's32[1]{0}', space=sflag, size = 0x4, scoped, tag = 'scoped memory for tpu_custom_call.1']
    #allocation4 [shape = 's32[1]{0}', space=sflag, size = 0x4, scoped, tag = 'scoped memory for tpu_custom_call.1']
    #allocation5 [shape = 'u8[512]{0}', space=vmem, size = 0x400, scoped, tag = 'input window, operand 1, single buffered']
    #allocation6 [shape = 's32[1]{0}', space=sflag, size = 0x4, scoped, tag = 'scoped memory for tpu_custom_call.1']
    #allocation7 [shape = 'u8[4096]{0}', space=vmem, size = 0x1000, scoped, tag = 'input window, operand 2, single buffered']
    #allocation8 [shape = 'u8[16384]{0}', space=vmem, size = 0x4000, scoped, tag = 'input window, operand 4, single buffered']
    #allocation9 [shape = 's32[1]{0}', space=sflag, size = 0x4, scoped, tag = 'scoped memory for tpu_custom_call.1']
    #allocation10 [shape = 'u8[512]{0}', space=vmem, size = 0x400, scoped, tag = 'output window, operand 0, single buffered']
    %10 = vsyncpa [#allocation3], 0
    %11 = vsyncpa [#allocation6], 0
    %12 = vsyncpa [#allocation9], 0
    %13 = vsyncpa [#allocation4], 0
    // Predicated region
    $region2: #{tpu_custom_call.1} parent=1 // pred_check
      _
    $region3: #{tpu_custom_call.1} parent=1 // pred_check_branch
      %15 = sbr.rel (0) target = $region5
    $region4: #{tpu_custom_call.1} parent=1 // pred_region
      %17 = vsyncadd [#allocation3], 0
      %s19 = sshll.u32 %s0, 4
      %s20 = int_to_ptr.hbm [resolvable:$true] %s19
      %s21 = sshll.u32 [#allocation2], 4
      %s22 = int_to_ptr.vmem [resolvable:$true] %s21
      %24 = dma.hbm_to_vmem [thread:$0]  %s20, 16, %s22, [#allocation3]
    $region5: #{tpu_custom_call.1} parent=1 // pred_fallthru
      _
    // Predicated region
    $region6: #{tpu_custom_call.1} parent=1 // pred_check
      _
    $region7: #{tpu_custom_call.1} parent=1 // pred_check_branch
      %26 = sbr.rel (0) target = $region9
    $region8: #{tpu_custom_call.1} parent=1 // pred_region
      %28 = vsyncadd [#allocation6], 0
      %s30 = sshll.u32 %s1, 4
      %s31 = int_to_ptr.hbm [resolvable:$true] %s30
      %s32 = sshll.u32 [#allocation5], 4
      %s33 = int_to_ptr.vmem [resolvable:$true] %s32
      %35 = dma.hbm_to_vmem [thread:$0]  %s31, 16, %s33, [#allocation6]
    $region9: #{tpu_custom_call.1} parent=1 // pred_fallthru
      _
    // Predicated region
    $region10: #{tpu_custom_call.1} parent=1 // pred_check
      _
    $region11: #{tpu_custom_call.1} parent=1 // pred_check_branch
      %37 = sbr.rel (0) target = $region13
    $region12: #{tpu_custom_call.1} parent=1 // pred_region
      %39 = vsyncadd [#allocation6], 0
      %s41 = sshll.u32 %s2, 4
      %s42 = int_to_ptr.hbm [resolvable:$true] %s41
      %s43 = sshll.u32 [#allocation7], 4
      %s44 = int_to_ptr.vmem [resolvable:$true] %s43
      %46 = dma.hbm_to_vmem [thread:$0]  %s42, 128, %s44, [#allocation6]
    $region13: #{tpu_custom_call.1} parent=1 // pred_fallthru
      _
    // Predicated region
    $region14: #{tpu_custom_call.1} parent=1 // pred_check
      _
    $region15: #{tpu_custom_call.1} parent=1 // pred_check_branch
      %48 = sbr.rel (0) target = $region17
    $region16: #{tpu_custom_call.1} parent=1 // pred_region
      _
    $region17: #{tpu_custom_call.1} parent=1 // pred_fallthru
      _
    // Predicated region
    $region18: #{tpu_custom_call.1} parent=1 // pred_check
      _
    $region19: #{tpu_custom_call.1} parent=1 // pred_check_branch
      %50 = sbr.rel (0) target = $region21
    $region20: #{tpu_custom_call.1} parent=1 // pred_region
      %52 = vsyncadd [#allocation9], 0
      %s53 = sshll.u32 %s4, 4
      %s54 = int_to_ptr.hbm [resolvable:$true] %s53
      %s55 = sshll.u32 [#allocation8], 4
      %s56 = int_to_ptr.vmem [resolvable:$true] %s55
      %61 = dma.hbm_to_vmem [thread:$0]  %s54, 512, %s56, [#allocation9], 128, 128, 8
    $region21: #{tpu_custom_call.1} parent=1 // pred_fallthru
      _
    // Predicated region
    $region22: #{tpu_custom_call.1} parent=1 // pred_check
      _
    $region23: #{tpu_custom_call.1} parent=1 // pred_check_branch
      %63 = sbr.rel (0) target = $region25
    $region24: #{tpu_custom_call.1} parent=1 // pred_region
      %65 = dma.done [#allocation3], 16
    $region25: #{tpu_custom_call.1} parent=1 // pred_fallthru
      _
    // Predicated region
    $region26: #{tpu_custom_call.1} parent=1 // pred_check
      _
    $region27: #{tpu_custom_call.1} parent=1 // pred_check_branch
      %67 = sbr.rel (0) target = $region29
    $region28: #{tpu_custom_call.1} parent=1 // pred_region
      %69 = dma.done [#allocation6], 16
    $region29: #{tpu_custom_call.1} parent=1 // pred_fallthru
      _
    // Predicated region
    $region30: #{tpu_custom_call.1} parent=1 // pred_check
      _
    $region31: #{tpu_custom_call.1} parent=1 // pred_check_branch
      %71 = sbr.rel (0) target = $region33
    $region32: #{tpu_custom_call.1} parent=1 // pred_region
      %73 = dma.done [#allocation6], 128
    $region33: #{tpu_custom_call.1} parent=1 // pred_fallthru
      _
    // Predicated region
    $region34: #{tpu_custom_call.1} parent=1 // pred_check
      _
    $region35: #{tpu_custom_call.1} parent=1 // pred_check_branch
      %75 = sbr.rel (0) target = $region37
    $region36: #{tpu_custom_call.1} parent=1 // pred_region
      %77 = dma.done [#allocation9], 512
    $region37: #{tpu_custom_call.1} parent=1 // pred_fallthru
      _
    %v78 = vld [vmem:[#allocation2] sm:$0x1]
    %v79 = vmax.f32 %v78, 0.0
    %v80 = vmin.f32 %v79, 1.0
    %v81 = vld [vmem:[#allocation5] sm:$0x1]
    %vm82 = vcmp.gt.f32.partialorder %v81, 0.5
    %v83 = vsel %vm82, 1.0, %v80
    %v84 = vld [vmem:[#allocation7] sm:$0xff]
    %v85 = vld [vmem:[%s3] sm:$0x1]
    %vm86 = vcmask 64512
    %v88 = vsel %vm86, %v83, 0
    %90 = vmatpush.msra.mxu0 0.0
    %91 = vmatpush.msra.mxu0 0.0
    %92 = vmatpush.msra.mxu0 0.0
    %93 = vmatpush.msra.mxu0 0.0
    %94 = vmatpush.msra.mxu0 0.0
    %95 = vmatpush.msra.mxu0 0.0
    %96 = vmatpush.msra.mxu0 0.0
    %97 = vmatpush.msra.mxu0 0.0
    %98 = vmatpush.msra.mxu0 0.0
    %99 = vmatpush.msra.mxu0 0.0
    %100 = vmatpush.msra.mxu0 0.0
    %101 = vmatpush.msra.mxu0 0.0
    %102 = vmatpush.msra.mxu0 0.0
    %103 = vmatpush.msra.mxu0 0.0
    %104 = vmatpush.msra.mxu0 0.0
    %v105 = vand.u32 %v84, 4294901760
    %106 = vmatpush.msra.mxu0 %v105
    %v107 = vand.u32 %v88, 4294901760
    %v108 = vsub.f32 %v88, %v107
    %v109 = vand.u32 %v108, 4294901760
    %v110 = vsub.f32 %v108, %v109
    %v111 = vand.u32 %v110, 4294901760
    %112 = vmatmul.f32.gmra.mxu0 %v111
    %v113 = vpop.f32.mrf.mxu0
    %v114 = vadd.f32 %v85, %v113
    %115 = vdwg.mxu0
    %116 = vmatpush.msra.mxu0 0.0
    %117 = vmatpush.msra.mxu0 0.0
    %118 = vmatpush.msra.mxu0 0.0
    %119 = vmatpush.msra.mxu0 0.0
    %120 = vmatpush.msra.mxu0 0.0
    %121 = vmatpush.msra.mxu0 0.0
    %122 = vmatpush.msra.mxu0 0.0
    %123 = vmatpush.msra.mxu0 0.0
    %124 = vmatpush.msra.mxu0 0.0
    %125 = vmatpush.msra.mxu0 0.0
    %126 = vmatpush.msra.mxu0 0.0
    %127 = vmatpush.msra.mxu0 0.0
    %128 = vmatpush.msra.mxu0 0.0
    %129 = vmatpush.msra.mxu0 0.0
    %130 = vmatpush.msra.mxu0 0.0
    %v131 = vand.u32 %v84, 4294901760
    %v132 = vsub.f32 %v84, %v131
    %v133 = vand.u32 %v132, 4294901760
    %v134 = vsub.f32 %v132, %v133
    %v135 = vand.u32 %v134, 4294901760
    %136 = vmatpush.msra.mxu0 %v135
    %v137 = vand.u32 %v88, 4294901760
    %138 = vmatmul.f32.gmra.mxu0 %v137
    %v139 = vpop.f32.mrf.mxu0
    %v140 = vadd.f32 %v114, %v139
    %141 = vdwg.mxu0
    %142 = vmatpush.msra.mxu0 0.0
    %143 = vmatpush.msra.mxu0 0.0
    %144 = vmatpush.msra.mxu0 0.0
    %145 = vmatpush.msra.mxu0 0.0
    %146 = vmatpush.msra.mxu0 0.0
    %147 = vmatpush.msra.mxu0 0.0
    %148 = vmatpush.msra.mxu0 0.0
    %149 = vmatpush.msra.mxu0 0.0
    %150 = vmatpush.msra.mxu0 0.0
    %151 = vmatpush.msra.mxu0 0.0
    %152 = vmatpush.msra.mxu0 0.0
    %153 = vmatpush.msra.mxu0 0.0
    %154 = vmatpush.msra.mxu0 0.0
    %155 = vmatpush.msra.mxu0 0.0
    %156 = vmatpush.msra.mxu0 0.0
    %v157 = vand.u32 %v84, 4294901760
    %v158 = vsub.f32 %v84, %v157
    %159 = vmatpush.msra.mxu0 %v158
    %v160 = vand.u32 %v88, 4294901760
    %v161 = vsub.f32 %v88, %v160
    %162 = vmatmul.f32.gmra.mxu0 %v161
    %v163 = vpop.f32.mrf.mxu0
    %v164 = vadd.f32 %v140, %v163
    %165 = vdwg.mxu0
    %166 = vmatpush.msra.mxu0 0.0
    %167 = vmatpush.msra.mxu0 0.0
    %168 = vmatpush.msra.mxu0 0.0
    %169 = vmatpush.msra.mxu0 0.0
    %170 = vmatpush.msra.mxu0 0.0
    %171 = vmatpush.msra.mxu0 0.0
    %172 = vmatpush.msra.mxu0 0.0
    %173 = vmatpush.msra.mxu0 0.0
    %174 = vmatpush.msra.mxu0 0.0
    %175 = vmatpush.msra.mxu0 0.0
    %176 = vmatpush.msra.mxu0 0.0
    %177 = vmatpush.msra.mxu0 0.0
    %178 = vmatpush.msra.mxu0 0.0
    %179 = vmatpush.msra.mxu0 0.0
    %180 = vmatpush.msra.mxu0 0.0
    %v181 = vand.u32 %v84, 4294901760
    %182 = vmatpush.msra.mxu0 %v181
    %v183 = vand.u32 %v88, 4294901760
    %v184 = vsub.f32 %v88, %v183
    %v185 = vand.u32 %v184, 4294901760
    %186 = vmatmul.f32.gmra.mxu0 %v185
    %v187 = vpop.f32.mrf.mxu0
    %v188 = vadd.f32 %v164, %v187
    %189 = vdwg.mxu0
    %190 = vmatpush.msra.mxu0 0.0
    %191 = vmatpush.msra.mxu0 0.0
    %192 = vmatpush.msra.mxu0 0.0
    %193 = vmatpush.msra.mxu0 0.0
    %194 = vmatpush.msra.mxu0 0.0
    %195 = vmatpush.msra.mxu0 0.0
    %196 = vmatpush.msra.mxu0 0.0
    %197 = vmatpush.msra.mxu0 0.0
    %198 = vmatpush.msra.mxu0 0.0
    %199 = vmatpush.msra.mxu0 0.0
    %200 = vmatpush.msra.mxu0 0.0
    %201 = vmatpush.msra.mxu0 0.0
    %202 = vmatpush.msra.mxu0 0.0
    %203 = vmatpush.msra.mxu0 0.0
    %204 = vmatpush.msra.mxu0 0.0
    %v205 = vand.u32 %v84, 4294901760
    %v206 = vsub.f32 %v84, %v205
    %v207 = vand.u32 %v206, 4294901760
    %208 = vmatpush.msra.mxu0 %v207
    %v209 = vand.u32 %v88, 4294901760
    %210 = vmatmul.f32.gmra.mxu0 %v209
    %v211 = vpop.f32.mrf.mxu0
    %v212 = vadd.f32 %v188, %v211
    %213 = vdwg.mxu0
    %214 = vmatpush.msra.mxu0 0.0
    %215 = vmatpush.msra.mxu0 0.0
    %216 = vmatpush.msra.mxu0 0.0
    %217 = vmatpush.msra.mxu0 0.0
    %218 = vmatpush.msra.mxu0 0.0
    %219 = vmatpush.msra.mxu0 0.0
    %220 = vmatpush.msra.mxu0 0.0
    %221 = vmatpush.msra.mxu0 0.0
    %222 = vmatpush.msra.mxu0 0.0
    %223 = vmatpush.msra.mxu0 0.0
    %224 = vmatpush.msra.mxu0 0.0
    %225 = vmatpush.msra.mxu0 0.0
    %226 = vmatpush.msra.mxu0 0.0
    %227 = vmatpush.msra.mxu0 0.0
    %228 = vmatpush.msra.mxu0 0.0
    %v229 = vand.u32 %v84, 4294901760
    %230 = vmatpush.msra.mxu0 %v229
    %v231 = vand.u32 %v88, 4294901760
    %232 = vmatmul.f32.gmra.mxu0 %v231
    %v233 = vpop.f32.mrf.mxu0
    %v234 = vadd.f32 %v212, %v233
    %235 = vdwg.mxu0
    %v236 = vld [vmem:[#allocation8] sm:$0xff]
    %v237 = vld [vmem:[#allocation8 + $0x8] sm:$0xff]
    %v238 = vld [vmem:[#allocation8 + $0x10] sm:$0xff]
    %v239 = vld [vmem:[#allocation8 + $0x18] sm:$0xff]
    %vm240 = vcmask 261120
    %v242 = vsel %vm240, %v234, 0
    %244 = vmatpush.msra.mxu0 0.0
    %245 = vmatpush.msra.mxu0 0.0
    %246 = vmatpush.msra.mxu0 0.0
    %247 = vmatpush.msra.mxu0 0.0
    %248 = vmatpush.msra.mxu0 0.0
    %249 = vmatpush.msra.mxu0 0.0
    %250 = vmatpush.msra.mxu0 0.0
    %251 = vmatpush.msra.mxu0 0.0
    %252 = vmatpush.msra.mxu0 0.0
    %253 = vmatpush.msra.mxu0 0.0
    %254 = vmatpush.msra.mxu0 0.0
    %255 = vmatpush.msra.mxu0 0.0
    %v256 = vand.u32 %v239, 4294901760
    %257 = vmatpush.msra.mxu0 %v256
    %v258 = vand.u32 %v238, 4294901760
    %259 = vmatpush.msra.mxu0 %v258
    %v260 = vand.u32 %v237, 4294901760
    %261 = vmatpush.msra.mxu0 %v260
    %v262 = vand.u32 %v236, 4294901760
    %263 = vmatpush.msra.mxu0 %v262
    %v264 = vand.u32 %v242, 4294901760
    %v265 = vsub.f32 %v242, %v264
    %v266 = vand.u32 %v265, 4294901760
    %v267 = vsub.f32 %v265, %v266
    %v268 = vand.u32 %v267, 4294901760
    %269 = vmatmul.f32.gmra.mxu0 %v268
    %v270 = vpop.f32.mrf.mxu0
    %v271 = vadd.f32 0.0, %v270
    %272 = vdwg.mxu0
    %273 = vmatpush.msra.mxu0 0.0
    %274 = vmatpush.msra.mxu0 0.0
    %275 = vmatpush.msra.mxu0 0.0
    %276 = vmatpush.msra.mxu0 0.0
    %277 = vmatpush.msra.mxu0 0.0
    %278 = vmatpush.msra.mxu0 0.0
    %279 = vmatpush.msra.mxu0 0.0
    %280 = vmatpush.msra.mxu0 0.0
    %281 = vmatpush.msra.mxu0 0.0
    %282 = vmatpush.msra.mxu0 0.0
    %283 = vmatpush.msra.mxu0 0.0
    %284 = vmatpush.msra.mxu0 0.0
    %v285 = vand.u32 %v239, 4294901760
    %v286 = vsub.f32 %v239, %v285
    %v287 = vand.u32 %v286, 4294901760
    %v288 = vsub.f32 %v286, %v287
    %v289 = vand.u32 %v288, 4294901760
    %290 = vmatpush.msra.mxu0 %v289
    %v291 = vand.u32 %v238, 4294901760
    %v292 = vsub.f32 %v238, %v291
    %v293 = vand.u32 %v292, 4294901760
    %v294 = vsub.f32 %v292, %v293
    %v295 = vand.u32 %v294, 4294901760
    %296 = vmatpush.msra.mxu0 %v295
    %v297 = vand.u32 %v237, 4294901760
    %v298 = vsub.f32 %v237, %v297
    %v299 = vand.u32 %v298, 4294901760
    %v300 = vsub.f32 %v298, %v299
    %v301 = vand.u32 %v300, 4294901760
    %302 = vmatpush.msra.mxu0 %v301
    %v303 = vand.u32 %v236, 4294901760
    %v304 = vsub.f32 %v236, %v303
    %v305 = vand.u32 %v304, 4294901760
    %v306 = vsub.f32 %v304, %v305
    %v307 = vand.u32 %v306, 4294901760
    %308 = vmatpush.msra.mxu0 %v307
    %v309 = vand.u32 %v242, 4294901760
    %310 = vmatmul.f32.gmra.mxu0 %v309
    %v311 = vpop.f32.mrf.mxu0
    %v312 = vadd.f32 %v271, %v311
    %313 = vdwg.mxu0
    %314 = vmatpush.msra.mxu0 0.0
    %315 = vmatpush.msra.mxu0 0.0
    %316 = vmatpush.msra.mxu0 0.0
    %317 = vmatpush.msra.mxu0 0.0
    %318 = vmatpush.msra.mxu0 0.0
    %319 = vmatpush.msra.mxu0 0.0
    %320 = vmatpush.msra.mxu0 0.0
    %321 = vmatpush.msra.mxu0 0.0
    %322 = vmatpush.msra.mxu0 0.0
    %323 = vmatpush.msra.mxu0 0.0
    %324 = vmatpush.msra.mxu0 0.0
    %325 = vmatpush.msra.mxu0 0.0
    %v326 = vand.u32 %v239, 4294901760
    %v327 = vsub.f32 %v239, %v326
    %328 = vmatpush.msra.mxu0 %v327
    %v329 = vand.u32 %v238, 4294901760
    %v330 = vsub.f32 %v238, %v329
    %331 = vmatpush.msra.mxu0 %v330
    %v332 = vand.u32 %v237, 4294901760
    %v333 = vsub.f32 %v237, %v332
    %334 = vmatpush.msra.mxu0 %v333
    %v335 = vand.u32 %v236, 4294901760
    %v336 = vsub.f32 %v236, %v335
    %337 = vmatpush.msra.mxu0 %v336
    %v338 = vand.u32 %v242, 4294901760
    %v339 = vsub.f32 %v242, %v338
    %340 = vmatmul.f32.gmra.mxu0 %v339
    %v341 = vpop.f32.mrf.mxu0
    %v342 = vadd.f32 %v312, %v341
    %343 = vdwg.mxu0
    %344 = vmatpush.msra.mxu0 0.0
    %345 = vmatpush.msra.mxu0 0.0
    %346 = vmatpush.msra.mxu0 0.0
    %347 = vmatpush.msra.mxu0 0.0
    %348 = vmatpush.msra.mxu0 0.0
    %349 = vmatpush.msra.mxu0 0.0
    %350 = vmatpush.msra.mxu0 0.0
    %351 = vmatpush.msra.mxu0 0.0
    %352 = vmatpush.msra.mxu0 0.0
    %353 = vmatpush.msra.mxu0 0.0
    %354 = vmatpush.msra.mxu0 0.0
    %355 = vmatpush.msra.mxu0 0.0
    %v356 = vand.u32 %v239, 4294901760
    %357 = vmatpush.msra.mxu0 %v356
    %v358 = vand.u32 %v238, 4294901760
    %359 = vmatpush.msra.mxu0 %v358
    %v360 = vand.u32 %v237, 4294901760
    %361 = vmatpush.msra.mxu0 %v360
    %v362 = vand.u32 %v236, 4294901760
    %363 = vmatpush.msra.mxu0 %v362
    %v364 = vand.u32 %v242, 4294901760
    %v365 = vsub.f32 %v242, %v364
    %v366 = vand.u32 %v365, 4294901760
    %367 = vmatmul.f32.gmra.mxu0 %v366
    %v368 = vpop.f32.mrf.mxu0
    %v369 = vadd.f32 %v342, %v368
    %370 = vdwg.mxu0
    %371 = vmatpush.msra.mxu0 0.0
    %372 = vmatpush.msra.mxu0 0.0
    %373 = vmatpush.msra.mxu0 0.0
    %374 = vmatpush.msra.mxu0 0.0
    %375 = vmatpush.msra.mxu0 0.0
    %376 = vmatpush.msra.mxu0 0.0
    %377 = vmatpush.msra.mxu0 0.0
    %378 = vmatpush.msra.mxu0 0.0
    %379 = vmatpush.msra.mxu0 0.0
    %380 = vmatpush.msra.mxu0 0.0
    %381 = vmatpush.msra.mxu0 0.0
    %382 = vmatpush.msra.mxu0 0.0
    %v383 = vand.u32 %v239, 4294901760
    %v384 = vsub.f32 %v239, %v383
    %v385 = vand.u32 %v384, 4294901760
    %386 = vmatpush.msra.mxu0 %v385
    %v387 = vand.u32 %v238, 4294901760
    %v388 = vsub.f32 %v238, %v387
    %v389 = vand.u32 %v388, 4294901760
    %390 = vmatpush.msra.mxu0 %v389
    %v391 = vand.u32 %v237, 4294901760
    %v392 = vsub.f32 %v237, %v391
    %v393 = vand.u32 %v392, 4294901760
    %394 = vmatpush.msra.mxu0 %v393
    %v395 = vand.u32 %v236, 4294901760
    %v396 = vsub.f32 %v236, %v395
    %v397 = vand.u32 %v396, 4294901760
    %398 = vmatpush.msra.mxu0 %v397
    %v399 = vand.u32 %v242, 4294901760
    %400 = vmatmul.f32.gmra.mxu0 %v399
    %v401 = vpop.f32.mrf.mxu0
    %v402 = vadd.f32 %v369, %v401
    %403 = vdwg.mxu0
    %404 = vmatpush.msra.mxu0 0.0
    %405 = vmatpush.msra.mxu0 0.0
    %406 = vmatpush.msra.mxu0 0.0
    %407 = vmatpush.msra.mxu0 0.0
    %408 = vmatpush.msra.mxu0 0.0
    %409 = vmatpush.msra.mxu0 0.0
    %410 = vmatpush.msra.mxu0 0.0
    %411 = vmatpush.msra.mxu0 0.0
    %412 = vmatpush.msra.mxu0 0.0
    %413 = vmatpush.msra.mxu0 0.0
    %414 = vmatpush.msra.mxu0 0.0
    %415 = vmatpush.msra.mxu0 0.0
    %v416 = vand.u32 %v239, 4294901760
    %417 = vmatpush.msra.mxu0 %v416
    %v418 = vand.u32 %v238, 4294901760
    %419 = vmatpush.msra.mxu0 %v418
    %v420 = vand.u32 %v237, 4294901760
    %421 = vmatpush.msra.mxu0 %v420
    %v422 = vand.u32 %v236, 4294901760
    %423 = vmatpush.msra.mxu0 %v422
    %v424 = vand.u32 %v242, 4294901760
    %425 = vmatmul.f32.gmra.mxu0 %v424
    %v426 = vpop.f32.mrf.mxu0
    %v427 = vadd.f32 %v402, %v426
    %428 = vdwg.mxu0
    %429 = vst [vmem:[#allocation10] sm:$0x1] %v427
    // Predicated region
    $region38: #{tpu_custom_call.1} parent=1 // pred_check
      _
    $region39: #{tpu_custom_call.1} parent=1 // pred_check_branch
      %431 = sbr.rel (0) target = $region41
    $region40: #{tpu_custom_call.1} parent=1 // pred_region
      %433 = vsyncadd [#allocation4], 0
      %s435 = sshll.u32 [#allocation10], 4
      %s436 = int_to_ptr.vmem [resolvable:$true] %s435
      %s437 = sshll.u32 %s5, 4
      %s438 = int_to_ptr.hbm [resolvable:$true] %s437
      %440 = dma.vmem_to_hbm [thread:$0]  %s436, 16, %s438, [#allocation4]
    $region41: #{tpu_custom_call.1} parent=1 // pred_fallthru
      _
    // Predicated region
    $region42: #{tpu_custom_call.1} parent=1 // pred_check
      _
    $region43: #{tpu_custom_call.1} parent=1 // pred_check_branch
      %442 = sbr.rel (0) target = $region45
    $region44: #{tpu_custom_call.1} parent=1 // pred_region
      %444 = dma.done [#allocation4], 16
    $region45: #{tpu_custom_call.1} parent=1 // pred_fallthru
      _
    %445 = vsyncpa [#allocation3], 1
    %446 = vsyncpa [#allocation6], 1
    %447 = vsyncpa [#allocation9], 1
    %448 = vsyncpa [#allocation4], 1

</llo_original>
